<compile_context>
chip_gen: v5e
topology: v5e:2x2
jax: 0.10.0
libtpu: 0.0.40
codegen_flags: <defaults>
</compile_context>

<pallas_src>
import functools

import jax
import jax.numpy as jnp
from jax import lax
from jax.experimental import pallas as pl
from jax.experimental.pallas import tpu as pltpu


# ----------------------------- tiled GEMM kernel -----------------------------

def _gemm_kernel(a_ref, w_ref, b_ref, o_ref, acc_ref, *, act):
    k = pl.program_id(2)

    @pl.when(k == 0)
    def _():
        acc_ref[...] = jnp.zeros_like(acc_ref)

    acc_ref[...] += jnp.dot(a_ref[...], w_ref[...],
                            preferred_element_type=jnp.float32)

    @pl.when(k == pl.num_programs(2) - 1)
    def _():
        acc = acc_ref[...] + b_ref[...]          # bias row (1, tn) broadcast
        if act == "relu":
            acc = jnp.maximum(acc, 0.0)
        elif act == "sigmoid":
            acc = jax.nn.sigmoid(acc)
        elif act == "tanh":
            acc = jnp.tanh(acc)
        o_ref[...] = acc.astype(o_ref.dtype)


def _pick_tm(m):
    # Prefer 256 so the M axis still splits across 2 TCs (v7x) on big layers.
    if m <= 256:
        return m
    for t in (256, 128, 64, 32, 16, 8):
        if m % t == 0:
            return t
    return 256  # remainder M block handled by Pallas partial blocks


def _pick_tk(k):
    # K must be exactly tiled (garbage in a K-tail would corrupt the sum):
    # either an exact 128-multiple divisor, or the full K as one block.
    if k % 128 != 0:
        return k
    for t in (512, 384, 256, 128):
        if k % t == 0:
            return t
    return k


def _pick_tn(n):
    if n % 128 != 0:
        return n
    for t in (256, 128):
        if n % t == 0:
            return t
    return n


@functools.lru_cache(maxsize=None)
def _build_gemm(M, K, N, act):
    tm, tk, tn = _pick_tm(M), _pick_tk(K), _pick_tn(N)
    grid = (pl.cdiv(M, tm), pl.cdiv(N, tn), pl.cdiv(K, tk))
    kernel = functools.partial(_gemm_kernel, act=act)
    cost = pl.CostEstimate(
        flops=2 * M * N * K,
        transcendentals=M * N if act in ("sigmoid", "tanh") else 0,
        bytes_accessed=(M * K + K * N) * 2 + M * N * 4 + 4 * N,
    )
    fn = pl.pallas_call(
        kernel,
        out_shape=jax.ShapeDtypeStruct((M, N), jnp.float32),
        grid_spec=pltpu.PrefetchScalarGridSpec(
            num_scalar_prefetch=0,
            grid=grid,
            in_specs=[
                pl.BlockSpec((tm, tk), lambda i, j, k: (i, k)),
                pl.BlockSpec((tk, tn), lambda i, j, k: (k, j)),
                pl.BlockSpec((1, tn), lambda i, j, k: (0, j)),
            ],
            out_specs=pl.BlockSpec((tm, tn), lambda i, j, k: (i, j)),
            scratch_shapes=[pltpu.VMEM((tm, tn), jnp.float32)],
        ),
        compiler_params=pltpu.CompilerParams(
            dimension_semantics=("parallel", "parallel", "arbitrary")),
        cost_estimate=cost,
    )
    return jax.jit(fn)


def matmul_bias_act(a_bf16, w_bf16, bias_row_f32, act="none"):
    """a: (M, K) bf16, w: (K, N) bf16, bias: (1, N) f32 -> (M, N) f32."""
    M, K = a_bf16.shape
    K2, N = w_bf16.shape
    assert K == K2
    fn = _build_gemm(M, K, N, act)
    return fn(a_bf16, w_bf16, bias_row_f32)


# --------------------------- InstanceNorm kernel ------------------------------

def _inorm_kernel(x_ref, o_ref, *, eps, relu):
    x = x_ref[...].astype(jnp.float32)                 # (1, HW, C)
    mean = jnp.mean(x, axis=1, keepdims=True)
    xc = x - mean
    var = jnp.mean(xc * xc, axis=1, keepdims=True)     # biased, like PyTorch
    y = xc * lax.rsqrt(var + eps)
    if relu:
        y = jnp.maximum(y, 0.0)
    o_ref[...] = y.astype(o_ref.dtype)


@functools.lru_cache(maxsize=None)
def _build_inorm(B, HW, C, relu):
    fn = pl.pallas_call(
        functools.partial(_inorm_kernel, eps=1e-5, relu=relu),
        out_shape=jax.ShapeDtypeStruct((B, HW, C), jnp.float32),
        grid=(B,),
        in_specs=[pl.BlockSpec((1, HW, C), lambda b: (b, 0, 0))],
        out_specs=pl.BlockSpec((1, HW, C), lambda b: (b, 0, 0)),
        compiler_params=pltpu.CompilerParams(dimension_semantics=("parallel",)),
    )
    return jax.jit(fn)


def instance_norm(x_nhwc, relu):
    B, H, W, C = x_nhwc.shape
    fn = _build_inorm(B, H * W, C, relu)
    return fn(x_nhwc.reshape(B, H * W, C).astype(jnp.float32)).reshape(B, H, W, C)


# -------------------------------- conv glue -----------------------------------

def _im2col_nhwc(x, kh, kw, stride, pads, mode):
    """x: (B, H, W, C) -> ((B*Ho*Wo, kh*kw*C), Ho, Wo); K order = (kh, kw, C)."""
    (pt, pb), (pleft, pright) = pads
    if pt or pb or pleft or pright:
        x = jnp.pad(x, ((0, 0), (pt, pb), (pleft, pright), (0, 0)), mode=mode)
    B, Hp, Wp, C = x.shape
    Ho = (Hp - kh) // stride + 1
    Wo = (Wp - kw) // stride + 1
    cols = []
    for i in range(kh):
        for j in range(kw):
            cols.append(x[:, i:i + stride * Ho:stride,
                          j:j + stride * Wo:stride, :])
    a = jnp.stack(cols, axis=3)                        # (B, Ho, Wo, kh*kw, C)
    a = a.reshape(B * Ho * Wo, kh * kw * C)
    return a, Ho, Wo


def conv2d(x_nhwc, w_mat, bias_row, k, stride, pads, pad_mode="constant",
           act="none"):
    B = x_nhwc.shape[0]
    # Build the im2col matrix directly in bf16 (dominant, k*k-amplified traffic).
    a, Ho, Wo = _im2col_nhwc(x_nhwc.astype(jnp.bfloat16), k, k, stride, pads,
                             pad_mode)
    out = matmul_bias_act(a, w_mat, bias_row, act=act)
    return out.reshape(B, Ho, Wo, w_mat.shape[1])


def conv_transpose2d(x_nhwc, w_mat, bias_row, k, stride, pad, out_pad,
                     act="none"):
    # transposed conv == conv (flipped kernel, swapped channels) over a
    # zero-dilated, asymmetrically padded input.
    B, H, W, C = x_nhwc.shape
    xd = jnp.zeros((B, (H - 1) * stride + 1, (W - 1) * stride + 1, C),
                   x_nhwc.dtype)
    xd = xd.at[:, ::stride, ::stride, :].set(x_nhwc)
    p0 = k - 1 - pad
    p1 = k - 1 - pad + out_pad
    return conv2d(xd, w_mat, bias_row, k, 1, ((p0, p1), (p0, p1)),
                  pad_mode="constant", act=act)


def se_layer(h_nhwc, fc1_mat, fc2_mat):
    B, H, W, C = h_nhwc.shape
    y = jnp.mean(h_nhwc, axis=(1, 2))                             # (B, C)
    z1 = jnp.zeros((1, fc1_mat.shape[1]), jnp.float32)
    z2 = jnp.zeros((1, fc2_mat.shape[1]), jnp.float32)
    y = matmul_bias_act(y.astype(jnp.bfloat16), fc1_mat, z1, act="relu")
    y = matmul_bias_act(y.astype(jnp.bfloat16), fc2_mat, z2, act="sigmoid")
    return h_nhwc * y[:, None, None, :]


def resnet_block(x, p):
    h = conv2d(x, p["w1"], p["b1"], 3, 1, ((1, 1), (1, 1)), pad_mode="reflect")
    h = instance_norm(h, relu=True)
    h = conv2d(h, p["w2"], p["b2"], 3, 1, ((1, 1), (1, 1)), pad_mode="reflect")
    h = instance_norm(h, relu=False)
    h = se_layer(h, p["se1"], p["se2"])
    return x + h


# ----------------------------- parameter setup --------------------------------

def _conv_weight_to_mat(w):
    """(Cout, Cin, kh, kw) -> (kh*kw*Cin, Cout) bf16, matching im2col K order."""
    cout, cin, kh, kw = w.shape
    return jnp.transpose(w, (2, 3, 1, 0)).reshape(kh * kw * cin, cout).astype(
        jnp.bfloat16)


def init_params(key, input_nc=3, output_nc=3, ngf=64, n_blocks=6, reduction=16):
    keys = iter(jax.random.split(key, 64))

    def rnd(shape):
        return 0.05 * jax.random.normal(next(keys), shape, jnp.float32)

    def conv_p(cin, cout, k):
        w = rnd((cout, cin, k, k))
        b = rnd((cout,)).reshape(1, cout).astype(jnp.float32)
        return _conv_weight_to_mat(w), b

    def convT_p(cin, cout, k):
        wt = rnd((cin, cout, k, k))                       # PyTorch ConvT layout
        w = jnp.transpose(jnp.flip(wt, (2, 3)), (1, 0, 2, 3))
        b = rnd((cout,)).reshape(1, cout).astype(jnp.float32)
        return _conv_weight_to_mat(w), b

    params = {}
    params["c1_w"], params["c1_b"] = conv_p(input_nc, ngf, 7)
    params["c2_w"], params["c2_b"] = conv_p(ngf, ngf * 2, 3)
    params["c3_w"], params["c3_b"] = conv_p(ngf * 2, ngf * 4, 3)

    dim = ngf * 4
    blocks = []
    for _ in range(n_blocks):
        w1, b1 = conv_p(dim, dim, 3)
        w2, b2 = conv_p(dim, dim, 3)
        fc1 = rnd((dim // reduction, dim))                # Linear (out, in)
        fc2 = rnd((dim, dim // reduction))
        blocks.append(dict(w1=w1, b1=b1, w2=w2, b2=b2,
                           se1=fc1.T.astype(jnp.bfloat16),
                           se2=fc2.T.astype(jnp.bfloat16)))
    params["blocks"] = blocks

    params["u1_w"], params["u1_b"] = convT_p(ngf * 4, ngf * 2, 3)
    params["u2_w"], params["u2_b"] = convT_p(ngf * 2, ngf, 3)
    params["co_w"], params["co_b"] = conv_p(ngf, output_nc, 7)
    return params


# --------------------------------- forward ------------------------------------

def generator_forward(x_nchw, params):
    h = jnp.transpose(x_nchw, (0, 2, 3, 1))               # NCHW -> NHWC

    # stem: ReflectionPad(3) + Conv7 + IN + ReLU, two stride-2 downsamples
    h = conv2d(h, params["c1_w"], params["c1_b"], 7, 1, ((3, 3), (3, 3)),
               pad_mode="reflect")
    h = instance_norm(h, relu=True)
    h = conv2d(h, params["c2_w"], params["c2_b"], 3, 2, ((1, 1), (1, 1)))
    h = instance_norm(h, relu=True)
    h = conv2d(h, params["c3_w"], params["c3_b"], 3, 2, ((1, 1), (1, 1)))
    h = instance_norm(h, relu=True)

    for blk in params["blocks"]:
        h = resnet_block(h, blk)

    h = conv_transpose2d(h, params["u1_w"], params["u1_b"], 3, 2, 1, 1)
    h = instance_norm(h, relu=True)
    h = conv_transpose2d(h, params["u2_w"], params["u2_b"], 3, 2, 1, 1)
    h = instance_norm(h, relu=True)

    h = conv2d(h, params["co_w"], params["co_b"], 7, 1, ((3, 3), (3, 3)),
               pad_mode="reflect", act="tanh")

    return jnp.transpose(h, (0, 3, 1, 2))                 # NHWC -> NCHW


# ----------------------------------- main --------------------------------------

if __name__ == "__main__":
    key = jax.random.PRNGKey(0)
    pkey, xkey = jax.random.split(key)

    # input_nc=3; spatial 16 keeps the 2 downsamples / 2 upsamples exact:
    # 16 -> 8 -> 4 -> (resblocks) -> 8 -> 16
    x = jax.random.normal(xkey, (2, 3, 16, 16), jnp.float32)

    params = init_params(pkey, input_nc=3, output_nc=3, ngf=64, n_blocks=6)

    out = generator_forward(x, params)
    out = jax.block_until_ready(out)

    assert out.shape == (2, 3, 16, 16), out.shape
    assert bool(jnp.all(jnp.isfinite(out)))
    print("KERNEL_OK")
</pallas_src>

<mosaic_0001>
module attributes {stable_mosaic.version = 11 : i64} {
  func.func @_gemm_kernel(%arg0: i32, %arg1: i32, %arg2: i32, %arg3: memref<256x147xbf16, #tpu.memory_space<vmem>>, %arg4: memref<147x64xbf16, #tpu.memory_space<vmem>>, %arg5: memref<1x64xf32, #tpu.memory_space<vmem>>, %arg6: memref<256x64xf32, #tpu.memory_space<vmem>>, %arg7: memref<256x64xf32, #tpu.memory_space<vmem>>) attributes {dimension_semantics = [#tpu.dimension_semantics<parallel>, #tpu.dimension_semantics<parallel>, #tpu.dimension_semantics<arbitrary>], iteration_bounds = array<i64: 2, 1, 1>, scalar_prefetch = 0 : i64, scratch_operands = 1 : i64, tpu.core_type = #tpu.core_type<tc>, window_params = [{transform_indices = @transform_0, window_bounds = array<i64: 256, 147>}, {transform_indices = @transform_1, window_bounds = array<i64: 147, 64>}, {transform_indices = @transform_2, window_bounds = array<i64: 1, 64>}, {transform_indices = @transform_3, window_bounds = array<i64: 256, 64>}]} {
    %c0_i32 = arith.constant 0 : i32
    %0 = arith.cmpi eq, %arg2, %c0_i32 : i32
    %1 = arith.extui %0 : i1 to i32
    %c0_i32_0 = arith.constant 0 : i32
    %2 = arith.cmpi ne, %1, %c0_i32_0 : i32
    scf.if %2 {
      %cst_10 = arith.constant 0.000000e+00 : f32
      %12 = vector.broadcast %cst_10 : f32 to vector<256x64xf32>
      %c0_11 = arith.constant 0 : index
      %c0_12 = arith.constant 0 : index
      %13 = vector.load %arg7[%c0_11, %c0_12] : memref<256x64xf32, #tpu.memory_space<vmem>>, vector<256x64xf32>
      tpu.vector_store %arg7[%c0_11, %c0_12], %12 {strides = array<i32>} : memref<256x64xf32, #tpu.memory_space<vmem>>, vector<256x64xf32>,
    } else {
    }
    %c0 = arith.constant 0 : index
    %c0_1 = arith.constant 0 : index
    %3 = vector.load %arg7[%c0, %c0_1] : memref<256x64xf32, #tpu.memory_space<vmem>>, vector<256x64xf32>
    %c0_2 = arith.constant 0 : index
    %c0_3 = arith.constant 0 : index
    %4 = vector.load %arg3[%c0_2, %c0_3] : memref<256x147xbf16, #tpu.memory_space<vmem>>, vector<256x147xbf16>
    %c0_4 = arith.constant 0 : index
    %c0_5 = arith.constant 0 : index
    %5 = vector.load %arg4[%c0_4, %c0_5] : memref<147x64xbf16, #tpu.memory_space<vmem>>, vector<147x64xbf16>
    %cst = arith.constant dense<0.000000e+00> : vector<256x64xf32>
    %6 = tpu.matmul %4, %5, %cst {dimension_numbers = #tpu.dot_dimension_numbers<[1], [0], [0], [1], [0, 0, 1, 1], [], []>} : vector<256x147xbf16>, vector<147x64xbf16>, vector<256x64xf32> -> vector<256x64xf32>
    %7 = arith.addf %3, %6 : vector<256x64xf32>
    %c0_6 = arith.constant 0 : index
    %c0_7 = arith.constant 0 : index
    %8 = vector.load %arg7[%c0_6, %c0_7] : memref<256x64xf32, #tpu.memory_space<vmem>>, vector<256x64xf32>
    tpu.vector_store %arg7[%c0_6, %c0_7], %7 {strides = array<i32>} : memref<256x64xf32, #tpu.memory_space<vmem>>, vector<256x64xf32>,
    %c0_i32_8 = arith.constant 0 : i32
    %9 = arith.cmpi eq, %arg2, %c0_i32_8 : i32
    %10 = arith.extui %9 : i1 to i32
    %c0_i32_9 = arith.constant 0 : i32
    %11 = arith.cmpi ne, %10, %c0_i32_9 : i32
    scf.if %11 {
      %c0_10 = arith.constant 0 : index
      %c0_11 = arith.constant 0 : index
      %12 = vector.load %arg7[%c0_10, %c0_11] : memref<256x64xf32, #tpu.memory_space<vmem>>, vector<256x64xf32>
      %c0_12 = arith.constant 0 : index
      %c0_13 = arith.constant 0 : index
      %13 = vector.load %arg5[%c0_12, %c0_13] : memref<1x64xf32, #tpu.memory_space<vmem>>, vector<1x64xf32>
      %14 = vector.broadcast %13 : vector<1x64xf32> to vector<256x64xf32>
      %15 = arith.addf %12, %14 : vector<256x64xf32>
      %c0_14 = arith.constant 0 : index
      %c0_15 = arith.constant 0 : index
      %16 = vector.load %arg6[%c0_14, %c0_15] : memref<256x64xf32, #tpu.memory_space<vmem>>, vector<256x64xf32>
      tpu.vector_store %arg6[%c0_14, %c0_15], %15 {strides = array<i32>} : memref<256x64xf32, #tpu.memory_space<vmem>>, vector<256x64xf32>,
    } else {
    }
    return
  }
  func.func @transform_0(%arg0: i32, %arg1: i32, %arg2: i32) -> (i32, i32) {
    %c0_i32 = arith.constant 0 : i32
    return %arg0, %arg2 : i32, i32
  }
  func.func @transform_1(%arg0: i32, %arg1: i32, %arg2: i32) -> (i32, i32) {
    %c0_i32 = arith.constant 0 : i32
    return %arg2, %arg1 : i32, i32
  }
  func.func @transform_2(%arg0: i32, %arg1: i32, %arg2: i32) -> (i32, i32) {
    %c0_i32 = arith.constant 0 : i32
    %c0_i32_0 = arith.constant 0 : i32
    return %c0_i32, %arg1 : i32, i32
  }
  func.func @transform_3(%arg0: i32, %arg1: i32, %arg2: i32) -> (i32, i32) {
    %c0_i32 = arith.constant 0 : i32
    return %arg0, %arg1 : i32, i32
  }
}

</mosaic_0001>

<llo_original>
// kernel: tpu_custom_call.1
$region0: #{tpu_custom_call.1}
  #allocation0 [shape = 'u32[]', space=smem, size = 0x4, offset = 0x4, fixed_abs, tag = 'smem constant byte address 0x4 - core index']
  #allocation1 [shape = 'u32[72,128]{1,0:T(1,128)}', space=vmem, size = 0x9000, scoped, tag = 'internal scratch']
  #allocation2 [shape = 'f32[256,64]{1,0:T(8,128)}', space=vmem, size = 0x20000, scoped, tag = 'scratch operand']
  %s0 = inlined_call_operand.vmem [shape: bf16[512,147], index: 0, kind: input, shape index: {}]
  %s1 = inlined_call_operand.vmem [shape: bf16[147,64], index: 1, kind: input, shape index: {}]
  %s2 = inlined_call_operand.vmem [shape: f32[1,64], index: 2, kind: input, shape index: {}]
  %s3 = inlined_call_operand.vmem [shape: f32[512,64], index: 3, kind: output, shape index: {}]
  %s4 = sld [smem:[#allocation0]]
  $region53: #{tpu_custom_call.1} parent=0
    _
  %s6 = ssub.s32 1, %s4
  %s7 = scalar_select 0, %s6, %s4
  loop: start=0, step=1, limit=4
  $region2: #{tpu_custom_call.1} parent=0 // loop_pre_header
    _
  $region3: #{tpu_custom_call.1} parent=0 // loop_header
    %s9 = sphi 0, %s13
    %p10 = scmp.ge.s32.totalorder %s9, 4
    %s16 = sphi 0, %s35
    %s17 = sphi 0, %s31
    %s18 = sphi 0, %s27
    %s19 = sphi 0, %s16
    %s20 = sphi 0, %s17
    %s21 = sphi 0, %s18
    %s22 = sphi 0, %s19
    %s23 = sphi 0, %s20
    %s24 = sphi 0, %s21
    %s40 = sphi 0, %s42
    %s43 = sphi 0, %s40
    %s44 = sphi 0, %s43
    %s60 = sphi 0, %s44
    %s68 = sphi 0, %s70
    %s71 = sphi 0, %s68
    %s72 = sphi 0, %s71
    %s88 = sphi 0, %s72
    %s94 = sphi 0, %s96
    %s97 = sphi 0, %s94
    %s98 = sphi 0, %s97
    %s114 = sphi 0, %s98
    %s122 = sphi 0, %s124
    %s125 = sphi 0, %s122
    %s126 = sphi 0, %s125
    %s142 = sphi 0, %s126
  $region4: #{tpu_custom_call.1} parent=0 // loop_header_branch
    %12 = sbr.rel (%p10) target = $region8
  $region5: #{tpu_custom_call.1} parent=0 // loop_body
    %s14 = ssub.s32 %s9, 1
    %s15 = ssub.s32 %s9, 2
    %s25 = sadd.s32 1, %s18
    %p26 = scmp.ge.s32.totalorder %s25, 1
    %s27 = scalar_select %p26, 0, %s25
    %s28 = sadd.s32 1, %s17
    %s29 = scalar_select %p26, %s28, %s17
    %p30 = scmp.ge.s32.totalorder %s29, 1
    %s31 = scalar_select %p30, 0, %s29
    %s32 = sadd.s32 1, %s16
    %s33 = scalar_select %p30, %s32, %s16
    %p34 = scmp.ge.s32.totalorder %s33, 2
    %s35 = scalar_select %p34, 0, %s33
    %s36 = ssub.s32 %s16, %s35
    %s37 = ssub.s32 %s18, %s27
    %s38 = sor.u32 %s36, %s37
    %p39 = scmp.eq.s32.totalorder %s38, 0
    %s41 = sadd.s32 %s40, 1
    %s42 = scalar_select %p39, %s40, %s41
    %p45 = pneg %p39
    %p46 = scmp.eq.s32.totalorder %s9, 1
    %p47 = por %p45, %p46
    %p48 = scmp.ne.s32.totalorder %s40, %s43
    %p49 = scmp.eq.s32.totalorder %s9, 0
    %p50 = por %p48, %p49
    %p51 = scmp.ne.s32.totalorder %s40, %s43
    %p52 = scmp.eq.s32.totalorder %s14, 1
    %p53 = por %p51, %p52
    %p54 = scmp.ne.s32.totalorder %s43, %s44
    %p55 = scmp.eq.s32.totalorder %s14, 0
    %p56 = por %p54, %p55
    %p57 = scmp.ne.s32.totalorder %s43, %s44
    %p58 = scmp.eq.s32.totalorder %s15, 1
    %p59 = por %p57, %p58
    %p61 = scmp.ne.s32.totalorder %s44, %s60
    %p62 = scmp.eq.s32.totalorder %s15, 0
    %p63 = por %p61, %p62
    %s64 = ssub.s32 %s18, %s27
    %s65 = ssub.s32 %s17, %s31
    %s66 = sor.u32 %s64, %s65
    %p67 = scmp.eq.s32.totalorder %s66, 0
    %s69 = sadd.s32 %s68, 1
    %s70 = scalar_select %p67, %s68, %s69
    %p73 = pneg %p67
    %p74 = scmp.eq.s32.totalorder %s9, 1
    %p75 = por %p73, %p74
    %p76 = scmp.ne.s32.totalorder %s68, %s71
    %p77 = scmp.eq.s32.totalorder %s9, 0
    %p78 = por %p76, %p77
    %p79 = scmp.ne.s32.totalorder %s68, %s71
    %p80 = scmp.eq.s32.totalorder %s14, 1
    %p81 = por %p79, %p80
    %p82 = scmp.ne.s32.totalorder %s71, %s72
    %p83 = scmp.eq.s32.totalorder %s14, 0
    %p84 = por %p82, %p83
    %p85 = scmp.ne.s32.totalorder %s71, %s72
    %p86 = scmp.eq.s32.totalorder %s15, 1
    %p87 = por %p85, %p86
    %p89 = scmp.ne.s32.totalorder %s72, %s88
    %p90 = scmp.eq.s32.totalorder %s15, 0
    %p91 = por %p89, %p90
    %s92 = ssub.s32 %s17, %s31
    %p93 = scmp.eq.s32.totalorder %s92, 0
    %s95 = sadd.s32 %s94, 1
    %s96 = scalar_select %p93, %s94, %s95
    %p99 = pneg %p93
    %p100 = scmp.eq.s32.totalorder %s9, 1
    %p101 = por %p99, %p100
    %p102 = scmp.ne.s32.totalorder %s94, %s97
    %p103 = scmp.eq.s32.totalorder %s9, 0
    %p104 = por %p102, %p103
    %p105 = scmp.ne.s32.totalorder %s94, %s97
    %p106 = scmp.eq.s32.totalorder %s14, 1
    %p107 = por %p105, %p106
    %p108 = scmp.ne.s32.totalorder %s97, %s98
    %p109 = scmp.eq.s32.totalorder %s14, 0
    %p110 = por %p108, %p109
    %p111 = scmp.ne.s32.totalorder %s97, %s98
    %p112 = scmp.eq.s32.totalorder %s15, 1
    %p113 = por %p111, %p112
    %p115 = scmp.ne.s32.totalorder %s98, %s114
    %p116 = scmp.eq.s32.totalorder %s15, 0
    %p117 = por %p115, %p116
    %s118 = ssub.s32 %s16, %s35
    %s119 = ssub.s32 %s17, %s31
    %s120 = sor.u32 %s118, %s119
    %p121 = scmp.eq.s32.totalorder %s120, 0
    %s123 = sadd.s32 %s122, 1
    %s124 = scalar_select %p121, %s122, %s123
    %p127 = pneg %p121
    %p128 = scmp.eq.s32.totalorder %s9, 1
    %p129 = por %p127, %p128
    %p130 = scmp.ne.s32.totalorder %s122, %s125
    %p131 = scmp.eq.s32.totalorder %s9, 0
    %p132 = por %p130, %p131
    %p133 = scmp.ne.s32.totalorder %s122, %s125
    %p134 = scmp.eq.s32.totalorder %s14, 1
    %p135 = por %p133, %p134
    %p136 = scmp.ne.s32.totalorder %s125, %s126
    %p137 = scmp.eq.s32.totalorder %s14, 0
    %p138 = por %p136, %p137
    %p139 = scmp.ne.s32.totalorder %s125, %s126
    %p140 = scmp.eq.s32.totalorder %s15, 1
    %p141 = por %p139, %p140
    %p143 = scmp.ne.s32.totalorder %s126, %s142
    %p144 = scmp.eq.s32.totalorder %s15, 0
    %p145 = por %p143, %p144
    %p146 = scmp.le.s32.totalorder 1, %s9
    %p147 = scmp.lt.s32.totalorder %s9, 3
    %p148 = pnand %p146, %p147
    %p149 = pneg %p148
    // Predicated region
    $region9: #{tpu_custom_call.1} parent=5 // pred_check
      _
    $region10: #{tpu_custom_call.1} parent=5 // pred_check_branch
      %151 = sbr.rel (%p148) target = $region12
    $region11: #{tpu_custom_call.1} parent=5 // pred_region
      %s152 = ssub.s32 %s9, 1
      // Predicated region
      $region13: #{tpu_custom_call.1} parent=11 // pred_check
        %p153 = pneg %p84
      $region14: #{tpu_custom_call.1} parent=11 // pred_check_branch
        %155 = sbr.rel (%p153) target = $region16
      $region15: #{tpu_custom_call.1} parent=11 // pred_region
        %s156 = smul.u32 19, %s21
        %p157 = scmp.lt.s32.totalorder %s156, 18
        %s158 = scalar_select %p157, %s156, 18
        %p159 = scmp.lt.s32.totalorder %s20, 0
        %s160 = scalar_select %p159, %s20, 0
        %s161 = sadd.s32 %s160, %s158
        %s162 = smul.addr %s161, 4
        %s163 = scalar_lea.vmem %s1, %s162
        %s164 = smul.u32 19, %s21
      $region16: #{tpu_custom_call.1} parent=11 // pred_fallthru
        _
      // Predicated region
      $region17: #{tpu_custom_call.1} parent=11 // pred_check
        %p165 = pneg %p110
      $region18: #{tpu_custom_call.1} parent=11 // pred_check_branch
        %167 = sbr.rel (%p165) target = $region20
      $region19: #{tpu_custom_call.1} parent=11 // pred_region
        %p168 = scmp.lt.s32.totalorder %s20, 0
        %s169 = scalar_select %p168, %s20, 0
        %s170 = scalar_lea.vmem %s2, %s169
      $region20: #{tpu_custom_call.1} parent=11 // pred_fallthru
        _
    $region12: #{tpu_custom_call.1} parent=5 // pred_fallthru
      _
    %p171 = scmp.lt.s32.totalorder %s9, 2
    // Predicated region
    $region21: #{tpu_custom_call.1} parent=5 // pred_check
      %p172 = pneg %p171
    $region22: #{tpu_custom_call.1} parent=5 // pred_check_branch
      %174 = sbr.rel (%p172) target = $region24
    $region23: #{tpu_custom_call.1} parent=5 // pred_region
      // Predicated region
      $region25: #{tpu_custom_call.1} parent=23 // pred_check
        %p175 = pneg %p50
      $region26: #{tpu_custom_call.1} parent=23 // pred_check_branch
        %177 = sbr.rel (%p175) target = $region28
      $region27: #{tpu_custom_call.1} parent=23 // pred_region
        %s178 = smul.u32 32, %s16
        %s179 = smul.u32 2, %s18
        %p180 = scmp.lt.s32.totalorder %s178, 63
        %s181 = scalar_select %p180, %s178, 63
        %p182 = scmp.lt.s32.totalorder %s179, 1
        %s183 = scalar_select %p182, %s179, 1
        %s184 = smul.addr %s181, 2
        %s185 = sadd.s32 %s183, %s184
        %s186 = smul.addr %s185, 4
        %s187 = scalar_lea.vmem %s0, %s186
        %s188 = smul.u32 32, %s16
        %s189 = smul.u32 2, %s18
      $region28: #{tpu_custom_call.1} parent=23 // pred_fallthru
        _
    $region24: #{tpu_custom_call.1} parent=5 // pred_fallthru
      _
    %p190 = scmp.le.s32.totalorder 1, %s9
    %p191 = scmp.lt.s32.totalorder %s9, 3
    %p192 = pnand %p190, %p191
    %p193 = pneg %p192
    // Predicated region
    $region29: #{tpu_custom_call.1} parent=5 // pred_check
      _
    $region30: #{tpu_custom_call.1} parent=5 // pred_check_branch
      %195 = sbr.rel (%p192) target = $region32
    $region31: #{tpu_custom_call.1} parent=5 // pred_region
      %s196 = ssub.s32 %s9, 1
      %s197 = smul.u32 32, %s19
      %s198 = smul.u32 2, %s21
      %p199 = scmp.lt.s32.totalorder %s197, 63
      %s200 = scalar_select %p199, %s197, 63
      %p201 = scmp.lt.s32.totalorder %s198, 1
      %s202 = scalar_select %p201, %s198, 1
      %s203 = smul.addr %s200, 2
      %s204 = sadd.s32 %s202, %s203
      %s205 = smul.addr %s204, 4
      %s206 = scalar_lea.vmem %s0, %s205
      %p207 = pneg %p56
      %p208 = pneg %p53
      %s209 = smul.u32 19, %s21
      %p210 = scmp.lt.s32.totalorder %s209, 18
      %s211 = scalar_select %p210, %s209, 18
      %p212 = scmp.lt.s32.totalorder %s20, 0
      %s213 = scalar_select %p212, %s20, 0
      %s214 = sadd.s32 %s213, %s211
      %s215 = smul.addr %s214, 4
      %s216 = scalar_lea.vmem %s1, %s215
      %p217 = pneg %p84
      %p218 = pneg %p81
      %p219 = scmp.lt.s32.totalorder %s20, 0
      %s220 = scalar_select %p219, %s20, 0
      %s221 = scalar_lea.vmem %s2, %s220
      %p222 = pneg %p110
      %p223 = pneg %p107
      %p224 = pneg %p138
      %p225 = pneg %p135
      %s226 = smul.u32 32, %s19
      %p227 = scmp.lt.s32.totalorder %s226, 63
      %s228 = scalar_select %p227, %s226, 63
      %p229 = scmp.lt.s32.totalorder %s20, 0
      %s230 = scalar_select %p229, %s20, 0
      %s231 = sadd.s32 %s230, %s228
      %s232 = smul.addr %s231, 8
      %s233 = scalar_lea.vmem %s3, %s232
      %s234 = smul.u32 32, %s19
      %s235 = smul.u32 2, %s21
      %p236 = scmp.lt.s32.totalorder %s234, 63
      %s237 = scalar_select %p236, %s234, 63
      %p238 = scmp.lt.s32.totalorder %s235, 1
      %s239 = scalar_select %p238, %s235, 1
      %s240 = smul.addr %s237, 2
      %s241 = sadd.s32 %s239, %s240
      %s242 = smul.addr %s241, 4
      %s243 = scalar_lea.vmem %s0, %s242
      %s244 = smul.u32 32, %s19
      %s245 = smul.u32 2, %s21
      %s246 = smul.u32 19, %s21
      %p247 = scmp.lt.s32.totalorder %s246, 18
      %s248 = scalar_select %p247, %s246, 18
      %p249 = scmp.lt.s32.totalorder %s20, 0
      %s250 = scalar_select %p249, %s20, 0
      %s251 = sadd.s32 %s250, %s248
      %s252 = smul.addr %s251, 4
      %s253 = scalar_lea.vmem %s1, %s252
      %s254 = smul.u32 19, %s21
      %p255 = scmp.lt.s32.totalorder %s20, 0
      %s256 = scalar_select %p255, %s20, 0
      %s257 = scalar_lea.vmem %s2, %s256
      %s258 = smul.u32 32, %s19
      %p259 = scmp.lt.s32.totalorder %s258, 63
      %s260 = scalar_select %p259, %s258, 63
      %p261 = scmp.lt.s32.totalorder %s20, 0
      %s262 = scalar_select %p261, %s20, 0
      %s263 = sadd.s32 %s262, %s260
      %s264 = smul.addr %s263, 8
      %s265 = scalar_lea.vmem %s3, %s264
      %s266 = smul.u32 32, %s19
      %p268 = scmp.eq.s32.totalorder %s21, 0
      // Predicated region
      $region33: #{tpu_custom_call.1} parent=31 // pred_check
        %p269 = pneg %p268
      $region34: #{tpu_custom_call.1} parent=31 // pred_check_branch
        %271 = sbr.rel (%p269) target = $region36
      $region35: #{tpu_custom_call.1} parent=31 // pred_region
        %vm272 = vcmask 523264
        %273 = vst.msk [vmem:[#allocation2] sm:$0xff] %vm272, 0.0
        %274 = vst.msk [vmem:[#allocation2 + $0x8] sm:$0xff] %vm272, 0.0
        %275 = vst.msk [vmem:[#allocation2 + $0x10] sm:$0xff] %vm272, 0.0
        %276 = vst.msk [vmem:[#allocation2 + $0x18] sm:$0xff] %vm272, 0.0
        %277 = vst.msk [vmem:[#allocation2 + $0x20] sm:$0xff] %vm272, 0.0
        %278 = vst.msk [vmem:[#allocation2 + $0x28] sm:$0xff] %vm272, 0.0
        %279 = vst.msk [vmem:[#allocation2 + $0x30] sm:$0xff] %vm272, 0.0
        %280 = vst.msk [vmem:[#allocation2 + $0x38] sm:$0xff] %vm272, 0.0
        %281 = vst.msk [vmem:[#allocation2 + $0x40] sm:$0xff] %vm272, 0.0
        %282 = vst.msk [vmem:[#allocation2 + $0x48] sm:$0xff] %vm272, 0.0
        %283 = vst.msk [vmem:[#allocation2 + $0x50] sm:$0xff] %vm272, 0.0
        %284 = vst.msk [vmem:[#allocation2 + $0x58] sm:$0xff] %vm272, 0.0
        %285 = vst.msk [vmem:[#allocation2 + $0x60] sm:$0xff] %vm272, 0.0
        %286 = vst.msk [vmem:[#allocation2 + $0x68] sm:$0xff] %vm272, 0.0
        %287 = vst.msk [vmem:[#allocation2 + $0x70] sm:$0xff] %vm272, 0.0
        %288 = vst.msk [vmem:[#allocation2 + $0x78] sm:$0xff] %vm272, 0.0
        %289 = vst.msk [vmem:[#allocation2 + $0x80] sm:$0xff] %vm272, 0.0
        %290 = vst.msk [vmem:[#allocation2 + $0x88] sm:$0xff] %vm272, 0.0
        %291 = vst.msk [vmem:[#allocation2 + $0x90] sm:$0xff] %vm272, 0.0
        %292 = vst.msk [vmem:[#allocation2 + $0x98] sm:$0xff] %vm272, 0.0
        %293 = vst.msk [vmem:[#allocation2 + $0xa0] sm:$0xff] %vm272, 0.0
        %294 = vst.msk [vmem:[#allocation2 + $0xa8] sm:$0xff] %vm272, 0.0
        %295 = vst.msk [vmem:[#allocation2 + $0xb0] sm:$0xff] %vm272, 0.0
        %296 = vst.msk [vmem:[#allocation2 + $0xb8] sm:$0xff] %vm272, 0.0
        %297 = vst.msk [vmem:[#allocation2 + $0xc0] sm:$0xff] %vm272, 0.0
        %298 = vst.msk [vmem:[#allocation2 + $0xc8] sm:$0xff] %vm272, 0.0
        %299 = vst.msk [vmem:[#allocation2 + $0xd0] sm:$0xff] %vm272, 0.0
        %300 = vst.msk [vmem:[#allocation2 + $0xd8] sm:$0xff] %vm272, 0.0
        %301 = vst.msk [vmem:[#allocation2 + $0xe0] sm:$0xff] %vm272, 0.0
        %302 = vst.msk [vmem:[#allocation2 + $0xe8] sm:$0xff] %vm272, 0.0
        %303 = vst.msk [vmem:[#allocation2 + $0xf0] sm:$0xff] %vm272, 0.0
        %304 = vst.msk [vmem:[#allocation2 + $0xf8] sm:$0xff] %vm272, 0.0
      $region36: #{tpu_custom_call.1} parent=31 // pred_fallthru
        _
      %v305 = vld [vmem:[#allocation2] sm:$0xff]
      %v306 = vld [vmem:[#allocation2 + $0x8] sm:$0xff]
      %v307 = vld [vmem:[#allocation2 + $0x10] sm:$0xff]
      %v308 = vld [vmem:[#allocation2 + $0x18] sm:$0xff]
      %v309 = vld [vmem:[#allocation2 + $0x20] sm:$0xff]
      %v310 = vld [vmem:[#allocation2 + $0x28] sm:$0xff]
      %v311 = vld [vmem:[#allocation2 + $0x30] sm:$0xff]
      %v312 = vld [vmem:[#allocation2 + $0x38] sm:$0xff]
      %v313 = vld [vmem:[#allocation2 + $0x40] sm:$0xff]
      %v314 = vld [vmem:[#allocation2 + $0x48] sm:$0xff]
      %v315 = vld [vmem:[#allocation2 + $0x50] sm:$0xff]
      %v316 = vld [vmem:[#allocation2 + $0x58] sm:$0xff]
      %v317 = vld [vmem:[#allocation2 + $0x60] sm:$0xff]
      %v318 = vld [vmem:[#allocation2 + $0x68] sm:$0xff]
      %v319 = vld [vmem:[#allocation2 + $0x70] sm:$0xff]
      %v320 = vld [vmem:[#allocation2 + $0x78] sm:$0xff]
      %v321 = vld [vmem:[#allocation2 + $0x80] sm:$0xff]
      %v322 = vld [vmem:[#allocation2 + $0x88] sm:$0xff]
      %v323 = vld [vmem:[#allocation2 + $0x90] sm:$0xff]
      %v324 = vld [vmem:[#allocation2 + $0x98] sm:$0xff]
      %v325 = vld [vmem:[#allocation2 + $0xa0] sm:$0xff]
      %v326 = vld [vmem:[#allocation2 + $0xa8] sm:$0xff]
      %v327 = vld [vmem:[#allocation2 + $0xb0] sm:$0xff]
      %v328 = vld [vmem:[#allocation2 + $0xb8] sm:$0xff]
      %v329 = vld [vmem:[#allocation2 + $0xc0] sm:$0xff]
      %v330 = vld [vmem:[#allocation2 + $0xc8] sm:$0xff]
      %v331 = vld [vmem:[#allocation2 + $0xd0] sm:$0xff]
      %v332 = vld [vmem:[#allocation2 + $0xd8] sm:$0xff]
      %v333 = vld [vmem:[#allocation2 + $0xe0] sm:$0xff]
      %v334 = vld [vmem:[#allocation2 + $0xe8] sm:$0xff]
      %v335 = vld [vmem:[#allocation2 + $0xf0] sm:$0xff]
      %v336 = vld [vmem:[#allocation2 + $0xf8] sm:$0xff]
      %v337 = vld [vmem:[%s243] sm:$0xff]
      %v338 = vld [vmem:[%s243 + $0x8] sm:$0xff]
      %v339 = vld [vmem:[%s243 + $0x10] sm:$0xff]
      %v340 = vld [vmem:[%s243 + $0x18] sm:$0xff]
      %v341 = vld [vmem:[%s243 + $0x20] sm:$0xff]
      %v342 = vld [vmem:[%s243 + $0x28] sm:$0xff]
      %v343 = vld [vmem:[%s243 + $0x30] sm:$0xff]
      %v344 = vld [vmem:[%s243 + $0x38] sm:$0xff]
      %v345 = vld [vmem:[%s243 + $0x40] sm:$0xff]
      %v346 = vld [vmem:[%s243 + $0x48] sm:$0xff]
      %v347 = vld [vmem:[%s243 + $0x50] sm:$0xff]
      %v348 = vld [vmem:[%s243 + $0x58] sm:$0xff]
      %v349 = vld [vmem:[%s243 + $0x60] sm:$0xff]
      %v350 = vld [vmem:[%s243 + $0x68] sm:$0xff]
      %v351 = vld [vmem:[%s243 + $0x70] sm:$0xff]
      %v352 = vld [vmem:[%s243 + $0x78] sm:$0xff]
      %v353 = vld [vmem:[%s243 + $0x80] sm:$0xff]
      %v354 = vld [vmem:[%s243 + $0x88] sm:$0xff]
      %v355 = vld [vmem:[%s243 + $0x90] sm:$0xff]
      %v356 = vld [vmem:[%s243 + $0x98] sm:$0xff]
      %v357 = vld [vmem:[%s243 + $0xa0] sm:$0xff]
      %v358 = vld [vmem:[%s243 + $0xa8] sm:$0xff]
      %v359 = vld [vmem:[%s243 + $0xb0] sm:$0xff]
      %v360 = vld [vmem:[%s243 + $0xb8] sm:$0xff]
      %v361 = vld [vmem:[%s243 + $0xc0] sm:$0xff]
      %v362 = vld [vmem:[%s243 + $0xc8] sm:$0xff]
      %v363 = vld [vmem:[%s243 + $0xd0] sm:$0xff]
      %v364 = vld [vmem:[%s243 + $0xd8] sm:$0xff]
      %v365 = vld [vmem:[%s243 + $0xe0] sm:$0xff]
      %v366 = vld [vmem:[%s243 + $0xe8] sm:$0xff]
      %v367 = vld [vmem:[%s243 + $0xf0] sm:$0xff]
      %v368 = vld [vmem:[%s243 + $0xf8] sm:$0xff]
      %v369 = vld [vmem:[%s253] sm:$0xf]
      %v370 = vld [vmem:[%s253 + $0x4] sm:$0xf]
      %v371 = vld [vmem:[%s253 + $0x8] sm:$0xf]
      %v372 = vld [vmem:[%s253 + $0xc] sm:$0xf]
      %v373 = vld [vmem:[%s253 + $0x10] sm:$0xf]
      %v374 = vld [vmem:[%s253 + $0x14] sm:$0xf]
      %v375 = vld [vmem:[%s253 + $0x18] sm:$0xf]
      %v376 = vld [vmem:[%s253 + $0x1c] sm:$0xf]
      %v377 = vld [vmem:[%s253 + $0x20] sm:$0xf]
      %v378 = vld [vmem:[%s253 + $0x24] sm:$0xf]
      %v379 = vld [vmem:[%s253 + $0x28] sm:$0xf]
      %v380 = vld [vmem:[%s253 + $0x2c] sm:$0xf]
      %v381 = vld [vmem:[%s253 + $0x30] sm:$0xf]
      %v382 = vld [vmem:[%s253 + $0x34] sm:$0xf]
      %v383 = vld [vmem:[%s253 + $0x38] sm:$0xf]
      %v384 = vld [vmem:[%s253 + $0x3c] sm:$0xf]
      %v385 = vld [vmem:[%s253 + $0x40] sm:$0xf]
      %v386 = vld [vmem:[%s253 + $0x44] sm:$0xf]
      %v387 = vld [vmem:[%s253 + $0x48] sm:$0x3]
      %v420 = vunpack.c.l.b16 %v337
      %v421 = vunpack.c.h.b16 %v337
      %v422 = vunpack.c.l.b16 %v338
      %v423 = vunpack.c.h.b16 %v338
      %v424 = vunpack.c.l.b16 %v339
      %v425 = vunpack.c.h.b16 %v339
      %v426 = vunpack.c.l.b16 %v340
      %v427 = vunpack.c.h.b16 %v340
      %v428 = vunpack.c.l.b16 %v341
      %v429 = vunpack.c.h.b16 %v341
      %v430 = vunpack.c.l.b16 %v342
      %v431 = vunpack.c.h.b16 %v342
      %v432 = vunpack.c.l.b16 %v343
      %v433 = vunpack.c.h.b16 %v343
      %v434 = vunpack.c.l.b16 %v344
      %v435 = vunpack.c.h.b16 %v344
      %v436 = vunpack.c.l.b16 %v345
      %v437 = vunpack.c.h.b16 %v345
      %v438 = vunpack.c.l.b16 %v346
      %v439 = vunpack.c.h.b16 %v346
      %v440 = vunpack.c.l.b16 %v347
      %v441 = vunpack.c.h.b16 %v347
      %v442 = vunpack.c.l.b16 %v348
      %v443 = vunpack.c.h.b16 %v348
      %v444 = vunpack.c.l.b16 %v349
      %v445 = vunpack.c.h.b16 %v349
      %v446 = vunpack.c.l.b16 %v350
      %v447 = vunpack.c.h.b16 %v350
      %v448 = vunpack.c.l.b16 %v351
      %v449 = vunpack.c.h.b16 %v351
      %v450 = vunpack.c.l.b16 %v352
      %v451 = vunpack.c.h.b16 %v352
      %v452 = vunpack.c.l.b16 %v353
      %v453 = vunpack.c.h.b16 %v353
      %v454 = vunpack.c.l.b16 %v354
      %v455 = vunpack.c.h.b16 %v354
      %v456 = vunpack.c.l.b16 %v355
      %v457 = vunpack.c.h.b16 %v355
      %v458 = vunpack.c.l.b16 %v356
      %v459 = vunpack.c.h.b16 %v356
      %v460 = vunpack.c.l.b16 %v357
      %v461 = vunpack.c.h.b16 %v357
      %v462 = vunpack.c.l.b16 %v358
      %v463 = vunpack.c.h.b16 %v358
      %v464 = vunpack.c.l.b16 %v359
      %v465 = vunpack.c.h.b16 %v359
      %v466 = vunpack.c.l.b16 %v360
      %v467 = vunpack.c.h.b16 %v360
      %v468 = vunpack.c.l.b16 %v361
      %v469 = vunpack.c.h.b16 %v361
      %v470 = vunpack.c.l.b16 %v362
      %v471 = vunpack.c.h.b16 %v362
      %v472 = vunpack.c.l.b16 %v363
      %v473 = vunpack.c.h.b16 %v363
      %v474 = vunpack.c.l.b16 %v364
      %v475 = vunpack.c.h.b16 %v364
      %v476 = vunpack.c.l.b16 %v365
      %v477 = vunpack.c.h.b16 %v365
      %v478 = vunpack.c.l.b16 %v366
      %v479 = vunpack.c.h.b16 %v366
      %v480 = vunpack.c.l.b16 %v367
      %v481 = vunpack.c.h.b16 %v367
      %v482 = vunpack.c.l.b16 %v368
      %v483 = vunpack.c.h.b16 %v368
      %v484 = vpack.c.b16 %v422, %v420
      %v485 = vpack.c.b16 %v423, %v421
      %v486 = vpack.c.b16 %v426, %v424
      %v487 = vpack.c.b16 %v427, %v425
      %v488 = vpack.c.b16 %v430, %v428
      %v489 = vpack.c.b16 %v431, %v429
      %v490 = vpack.c.b16 %v434, %v432
      %v491 = vpack.c.b16 %v435, %v433
      %v492 = vpack.c.b16 %v438, %v436
      %v493 = vpack.c.b16 %v439, %v437
      %v494 = vpack.c.b16 %v442, %v440
      %v495 = vpack.c.b16 %v443, %v441
      %v496 = vpack.c.b16 %v446, %v444
      %v497 = vpack.c.b16 %v447, %v445
      %v498 = vpack.c.b16 %v450, %v448
      %v499 = vpack.c.b16 %v451, %v449
      %v500 = vpack.c.b16 %v454, %v452
      %v501 = vpack.c.b16 %v455, %v453
      %v502 = vpack.c.b16 %v458, %v456
      %v503 = vpack.c.b16 %v459, %v457
      %v504 = vpack.c.b16 %v462, %v460
      %v505 = vpack.c.b16 %v463, %v461
      %v506 = vpack.c.b16 %v466, %v464
      %v507 = vpack.c.b16 %v467, %v465
      %v508 = vpack.c.b16 %v470, %v468
      %v509 = vpack.c.b16 %v471, %v469
      %v510 = vpack.c.b16 %v474, %v472
      %v511 = vpack.c.b16 %v475, %v473
      %v512 = vpack.c.b16 %v478, %v476
      %v513 = vpack.c.b16 %v479, %v477
      %v514 = vpack.c.b16 %v482, %v480
      %v515 = vpack.c.b16 %v483, %v481
      %v551 = vunpack.c.l.b16 %v369
      %v552 = vunpack.c.l.b16 %v370
      %v553 = vunpack.c.l.b16 %v371
      %v554 = vunpack.c.l.b16 %v372
      %v555 = vunpack.c.l.b16 %v373
      %v556 = vunpack.c.l.b16 %v374
      %v557 = vunpack.c.l.b16 %v375
      %v558 = vunpack.c.l.b16 %v376
      %v559 = vunpack.c.l.b16 %v377
      %v560 = vunpack.c.l.b16 %v378
      %v561 = vunpack.c.l.b16 %v379
      %v562 = vunpack.c.l.b16 %v380
      %v563 = vunpack.c.l.b16 %v381
      %v564 = vunpack.c.l.b16 %v382
      %v565 = vunpack.c.l.b16 %v383
      %v566 = vunpack.c.l.b16 %v384
      %v567 = vunpack.c.l.b16 %v385
      %v568 = vunpack.c.l.b16 %v386
      %v569 = vunpack.c.l.b16 %v387
      %v570 = vpack.c.b16 %v552, %v551
      %v571 = vpack.c.b16 %v554, %v553
      %v572 = vpack.c.b16 %v556, %v555
      %v573 = vpack.c.b16 %v558, %v557
      %v574 = vpack.c.b16 %v560, %v559
      %v575 = vpack.c.b16 %v562, %v561
      %v576 = vpack.c.b16 %v564, %v563
      %v577 = vpack.c.b16 %v566, %v565
      %v578 = vpack.c.b16 %v568, %v567
      %v579 = vpack.c.b16 %v569, %v569
      %vm589 = vcmask 154624
      %v591 = vsel %vm589, %v485, 0
      %v594 = vsel %vm589, %v487, 0
      %v597 = vsel %vm589, %v489, 0
      %v600 = vsel %vm589, %v491, 0
      %v603 = vsel %vm589, %v493, 0
      %v606 = vsel %vm589, %v495, 0
      %v609 = vsel %vm589, %v497, 0
      %v612 = vsel %vm589, %v499, 0
      %v615 = vsel %vm589, %v501, 0
      %v618 = vsel %vm589, %v503, 0
      %v621 = vsel %vm589, %v505, 0
      %v624 = vsel %vm589, %v507, 0
      %v627 = vsel %vm589, %v509, 0
      %v630 = vsel %vm589, %v511, 0
      %v633 = vsel %vm589, %v513, 0
      %v636 = vsel %vm589, %v515, 0
      %vm638 = vcmask 1040384
      %vm639 = vcmask 1041408
      %v640 = vsel %vm638, 4294967295, 65535
      %v641 = vsel %vm639, %v640, 0
      %v643 = vand.u32 %v579, %v641
      %645 = vmatpush.bf16.msra.mxu0 %v577
      %646 = vmatpush.bf16.msra.mxu0 %v576
      %647 = vmatpush.bf16.msra.mxu0 %v575
      %648 = vmatpush.bf16.msra.mxu0 %v574
      %649 = vmatpush.bf16.msra.mxu0 %v573
      %650 = vmatpush.bf16.msra.mxu0 %v572
      %651 = vmatpush.bf16.msra.mxu0 %v571
      %652 = vmatpush.bf16.msra.mxu0 %v570
      %653 = vmatmul.bf16.gmra.mxu0 %v484
      %v654 = vpop.f32.mrf.mxu0
      %v655 = vadd.f32 0.0, %v654
      %v656 = vpop.f32.mrf.mxu0
      %v657 = vadd.f32 0.0, %v656
      %658 = vmatmul.bf16.gmra.mxu0 %v486
      %v659 = vpop.f32.mrf.mxu0
      %v660 = vadd.f32 0.0, %v659
      %v661 = vpop.f32.mrf.mxu0
      %v662 = vadd.f32 0.0, %v661
      %663 = vmatmul.bf16.gmra.mxu0 %v488
      %v664 = vpop.f32.mrf.mxu0
      %v665 = vadd.f32 0.0, %v664
      %v666 = vpop.f32.mrf.mxu0
      %v667 = vadd.f32 0.0, %v666
      %668 = vmatmul.bf16.gmra.mxu0 %v490
      %v669 = vpop.f32.mrf.mxu0
      %v670 = vadd.f32 0.0, %v669
      %v671 = vpop.f32.mrf.mxu0
      %v672 = vadd.f32 0.0, %v671
      %673 = vmatmul.bf16.gmra.mxu0 %v492
      %v674 = vpop.f32.mrf.mxu0
      %v675 = vadd.f32 0.0, %v674
      %v676 = vpop.f32.mrf.mxu0
      %v677 = vadd.f32 0.0, %v676
      %678 = vmatmul.bf16.gmra.mxu0 %v494
      %v679 = vpop.f32.mrf.mxu0
      %v680 = vadd.f32 0.0, %v679
      %v681 = vpop.f32.mrf.mxu0
      %v682 = vadd.f32 0.0, %v681
      %683 = vmatmul.bf16.gmra.mxu0 %v496
      %v684 = vpop.f32.mrf.mxu0
      %v685 = vadd.f32 0.0, %v684
      %v686 = vpop.f32.mrf.mxu0
      %v687 = vadd.f32 0.0, %v686
      %688 = vmatmul.bf16.gmra.mxu0 %v498
      %v689 = vpop.f32.mrf.mxu0
      %v690 = vadd.f32 0.0, %v689
      %v691 = vpop.f32.mrf.mxu0
      %v692 = vadd.f32 0.0, %v691
      %693 = vmatmul.bf16.gmra.mxu0 %v500
      %v694 = vpop.f32.mrf.mxu0
      %v695 = vadd.f32 0.0, %v694
      %v696 = vpop.f32.mrf.mxu0
      %v697 = vadd.f32 0.0, %v696
      %698 = vmatmul.bf16.gmra.mxu0 %v502
      %v699 = vpop.f32.mrf.mxu0
      %v700 = vadd.f32 0.0, %v699
      %v701 = vpop.f32.mrf.mxu0
      %v702 = vadd.f32 0.0, %v701
      %703 = vmatmul.bf16.gmra.mxu0 %v504
      %v704 = vpop.f32.mrf.mxu0
      %v705 = vadd.f32 0.0, %v704
      %v706 = vpop.f32.mrf.mxu0
      %v707 = vadd.f32 0.0, %v706
      %708 = vmatmul.bf16.gmra.mxu0 %v506
      %v709 = vpop.f32.mrf.mxu0
      %v710 = vadd.f32 0.0, %v709
      %v711 = vpop.f32.mrf.mxu0
      %v712 = vadd.f32 0.0, %v711
      %713 = vmatmul.bf16.gmra.mxu0 %v508
      %v714 = vpop.f32.mrf.mxu0
      %v715 = vadd.f32 0.0, %v714
      %v716 = vpop.f32.mrf.mxu0
      %v717 = vadd.f32 0.0, %v716
      %718 = vmatmul.bf16.gmra.mxu0 %v510
      %v719 = vpop.f32.mrf.mxu0
      %v720 = vadd.f32 0.0, %v719
      %v721 = vpop.f32.mrf.mxu0
      %v722 = vadd.f32 0.0, %v721
      %723 = vmatmul.bf16.gmra.mxu0 %v512
      %v724 = vpop.f32.mrf.mxu0
      %v725 = vadd.f32 0.0, %v724
      %v726 = vpop.f32.mrf.mxu0
      %v727 = vadd.f32 0.0, %v726
      %728 = vmatmul.bf16.gmra.mxu0 %v514
      %v729 = vpop.f32.mrf.mxu0
      %v730 = vadd.f32 0.0, %v729
      %v731 = vpop.f32.mrf.mxu0
      %v732 = vadd.f32 0.0, %v731
      %733 = vdwg.mxu0
      %734 = vmatpush.bf16.msra.mxu0 0
      %735 = vmatpush.bf16.msra.mxu0 0
      %736 = vmatpush.bf16.msra.mxu0 0
      %737 = vmatpush.bf16.msra.mxu0 0
      %738 = vmatpush.bf16.msra.mxu0 0
      %739 = vmatpush.bf16.msra.mxu0 0
      %740 = vmatpush.bf16.msra.mxu0 %v643
      %741 = vmatpush.bf16.msra.mxu0 %v578
      %742 = vmatmul.bf16.gmra.mxu0 %v591
      %v743 = vpop.f32.mrf.mxu0
      %v744 = vadd.f32 %v655, %v743
      %v745 = vpop.f32.mrf.mxu0
      %v746 = vadd.f32 %v657, %v745
      %747 = vmatmul.bf16.gmra.mxu0 %v594
      %v748 = vpop.f32.mrf.mxu0
      %v749 = vadd.f32 %v660, %v748
      %v750 = vpop.f32.mrf.mxu0
      %v751 = vadd.f32 %v662, %v750
      %752 = vmatmul.bf16.gmra.mxu0 %v597
      %v753 = vpop.f32.mrf.mxu0
      %v754 = vadd.f32 %v665, %v753
      %v755 = vpop.f32.mrf.mxu0
      %v756 = vadd.f32 %v667, %v755
      %757 = vmatmul.bf16.gmra.mxu0 %v600
      %v758 = vpop.f32.mrf.mxu0
      %v759 = vadd.f32 %v670, %v758
      %v760 = vpop.f32.mrf.mxu0
      %v761 = vadd.f32 %v672, %v760
      %762 = vmatmul.bf16.gmra.mxu0 %v603
      %v763 = vpop.f32.mrf.mxu0
      %v764 = vadd.f32 %v675, %v763
      %v765 = vpop.f32.mrf.mxu0
      %v766 = vadd.f32 %v677, %v765
      %767 = vmatmul.bf16.gmra.mxu0 %v606
      %v768 = vpop.f32.mrf.mxu0
      %v769 = vadd.f32 %v680, %v768
      %v770 = vpop.f32.mrf.mxu0
      %v771 = vadd.f32 %v682, %v770
      %772 = vmatmul.bf16.gmra.mxu0 %v609
      %v773 = vpop.f32.mrf.mxu0
      %v774 = vadd.f32 %v685, %v773
      %v775 = vpop.f32.mrf.mxu0
      %v776 = vadd.f32 %v687, %v775
      %777 = vmatmul.bf16.gmra.mxu0 %v612
      %v778 = vpop.f32.mrf.mxu0
      %v779 = vadd.f32 %v690, %v778
      %v780 = vpop.f32.mrf.mxu0
      %v781 = vadd.f32 %v692, %v780
      %782 = vmatmul.bf16.gmra.mxu0 %v615
      %v783 = vpop.f32.mrf.mxu0
      %v784 = vadd.f32 %v695, %v783
      %v785 = vpop.f32.mrf.mxu0
      %v786 = vadd.f32 %v697, %v785
      %787 = vmatmul.bf16.gmra.mxu0 %v618
      %v788 = vpop.f32.mrf.mxu0
      %v789 = vadd.f32 %v700, %v788
      %v790 = vpop.f32.mrf.mxu0
      %v791 = vadd.f32 %v702, %v790
      %792 = vmatmul.bf16.gmra.mxu0 %v621
      %v793 = vpop.f32.mrf.mxu0
      %v794 = vadd.f32 %v705, %v793
      %v795 = vpop.f32.mrf.mxu0
      %v796 = vadd.f32 %v707, %v795
      %797 = vmatmul.bf16.gmra.mxu0 %v624
      %v798 = vpop.f32.mrf.mxu0
      %v799 = vadd.f32 %v710, %v798
      %v800 = vpop.f32.mrf.mxu0
      %v801 = vadd.f32 %v712, %v800
      %802 = vmatmul.bf16.gmra.mxu0 %v627
      %v803 = vpop.f32.mrf.mxu0
      %v804 = vadd.f32 %v715, %v803
      %v805 = vpop.f32.mrf.mxu0
      %v806 = vadd.f32 %v717, %v805
      %807 = vmatmul.bf16.gmra.mxu0 %v630
      %v808 = vpop.f32.mrf.mxu0
      %v809 = vadd.f32 %v720, %v808
      %v810 = vpop.f32.mrf.mxu0
      %v811 = vadd.f32 %v722, %v810
      %812 = vmatmul.bf16.gmra.mxu0 %v633
      %v813 = vpop.f32.mrf.mxu0
      %v814 = vadd.f32 %v725, %v813
      %v815 = vpop.f32.mrf.mxu0
      %v816 = vadd.f32 %v727, %v815
      %817 = vmatmul.bf16.gmra.mxu0 %v636
      %v818 = vpop.f32.mrf.mxu0
      %v819 = vadd.f32 %v730, %v818
      %v820 = vpop.f32.mrf.mxu0
      %v821 = vadd.f32 %v732, %v820
      %822 = vdwg.mxu0
      %v823 = vadd.f32 %v305, %v744
      %v824 = vadd.f32 %v306, %v746
      %v825 = vadd.f32 %v307, %v749
      %v826 = vadd.f32 %v308, %v751
      %v827 = vadd.f32 %v309, %v754
      %v828 = vadd.f32 %v310, %v756
      %v829 = vadd.f32 %v311, %v759
      %v830 = vadd.f32 %v312, %v761
      %v831 = vadd.f32 %v313, %v764
      %v832 = vadd.f32 %v314, %v766
      %v833 = vadd.f32 %v315, %v769
      %v834 = vadd.f32 %v316, %v771
      %v835 = vadd.f32 %v317, %v774
      %v836 = vadd.f32 %v318, %v776
      %v837 = vadd.f32 %v319, %v779
      %v838 = vadd.f32 %v320, %v781
      %v839 = vadd.f32 %v321, %v784
      %v840 = vadd.f32 %v322, %v786
      %v841 = vadd.f32 %v323, %v789
      %v842 = vadd.f32 %v324, %v791
      %v843 = vadd.f32 %v325, %v794
      %v844 = vadd.f32 %v326, %v796
      %v845 = vadd.f32 %v327, %v799
      %v846 = vadd.f32 %v328, %v801
      %v847 = vadd.f32 %v329, %v804
      %v848 = vadd.f32 %v330, %v806
      %v849 = vadd.f32 %v331, %v809
      %v850 = vadd.f32 %v332, %v811
      %v851 = vadd.f32 %v333, %v814
      %v852 = vadd.f32 %v334, %v816
      %v853 = vadd.f32 %v335, %v819
      %v854 = vadd.f32 %v336, %v821
      %vm855 = vcmask 523264
      %856 = vst.msk [vmem:[#allocation2] sm:$0xff] %vm855, %v823
      %857 = vst.msk [vmem:[#allocation2 + $0x8] sm:$0xff] %vm855, %v824
      %858 = vst.msk [vmem:[#allocation2 + $0x10] sm:$0xff] %vm855, %v825
      %859 = vst.msk [vmem:[#allocation2 + $0x18] sm:$0xff] %vm855, %v826
      %860 = vst.msk [vmem:[#allocation2 + $0x20] sm:$0xff] %vm855, %v827
      %861 = vst.msk [vmem:[#allocation2 + $0x28] sm:$0xff] %vm855, %v828
      %862 = vst.msk [vmem:[#allocation2 + $0x30] sm:$0xff] %vm855, %v829
      %863 = vst.msk [vmem:[#allocation2 + $0x38] sm:$0xff] %vm855, %v830
      %864 = vst.msk [vmem:[#allocation2 + $0x40] sm:$0xff] %vm855, %v831
      %865 = vst.msk [vmem:[#allocation2 + $0x48] sm:$0xff] %vm855, %v832
      %866 = vst.msk [vmem:[#allocation2 + $0x50] sm:$0xff] %vm855, %v833
      %867 = vst.msk [vmem:[#allocation2 + $0x58] sm:$0xff] %vm855, %v834
      %868 = vst.msk [vmem:[#allocation2 + $0x60] sm:$0xff] %vm855, %v835
      %869 = vst.msk [vmem:[#allocation2 + $0x68] sm:$0xff] %vm855, %v836
      %870 = vst.msk [vmem:[#allocation2 + $0x70] sm:$0xff] %vm855, %v837
      %871 = vst.msk [vmem:[#allocation2 + $0x78] sm:$0xff] %vm855, %v838
      %872 = vst.msk [vmem:[#allocation2 + $0x80] sm:$0xff] %vm855, %v839
      %873 = vst.msk [vmem:[#allocation2 + $0x88] sm:$0xff] %vm855, %v840
      %874 = vst.msk [vmem:[#allocation2 + $0x90] sm:$0xff] %vm855, %v841
      %875 = vst.msk [vmem:[#allocation2 + $0x98] sm:$0xff] %vm855, %v842
      %876 = vst.msk [vmem:[#allocation2 + $0xa0] sm:$0xff] %vm855, %v843
      %877 = vst.msk [vmem:[#allocation2 + $0xa8] sm:$0xff] %vm855, %v844
      %878 = vst.msk [vmem:[#allocation2 + $0xb0] sm:$0xff] %vm855, %v845
      %879 = vst.msk [vmem:[#allocation2 + $0xb8] sm:$0xff] %vm855, %v846
      %880 = vst.msk [vmem:[#allocation2 + $0xc0] sm:$0xff] %vm855, %v847
      %881 = vst.msk [vmem:[#allocation2 + $0xc8] sm:$0xff] %vm855, %v848
      %882 = vst.msk [vmem:[#allocation2 + $0xd0] sm:$0xff] %vm855, %v849
      %883 = vst.msk [vmem:[#allocation2 + $0xd8] sm:$0xff] %vm855, %v850
      %884 = vst.msk [vmem:[#allocation2 + $0xe0] sm:$0xff] %vm855, %v851
      %885 = vst.msk [vmem:[#allocation2 + $0xe8] sm:$0xff] %vm855, %v852
      %886 = vst.msk [vmem:[#allocation2 + $0xf0] sm:$0xff] %vm855, %v853
      %887 = vst.msk [vmem:[#allocation2 + $0xf8] sm:$0xff] %vm855, %v854
      // Predicated region
      $region37: #{tpu_custom_call.1} parent=31 // pred_check
        %p888 = pneg %p268
      $region38: #{tpu_custom_call.1} parent=31 // pred_check_branch
        %890 = sbr.rel (%p888) target = $region40
      $region39: #{tpu_custom_call.1} parent=31 // pred_region
        %v891 = vld [vmem:[#allocation2] sm:$0xff]
        %v892 = vld [vmem:[#allocation2 + $0x8] sm:$0xff]
        %v893 = vld [vmem:[#allocation2 + $0x10] sm:$0xff]
        %v894 = vld [vmem:[#allocation2 + $0x18] sm:$0xff]
        %v895 = vld [vmem:[#allocation2 + $0x20] sm:$0xff]
        %v896 = vld [vmem:[#allocation2 + $0x28] sm:$0xff]
        %v897 = vld [vmem:[#allocation2 + $0x30] sm:$0xff]
        %v898 = vld [vmem:[#allocation2 + $0x38] sm:$0xff]
        %v899 = vld [vmem:[#allocation2 + $0x40] sm:$0xff]
        %v900 = vld [vmem:[#allocation2 + $0x48] sm:$0xff]
        %v901 = vld [vmem:[#allocation2 + $0x50] sm:$0xff]
        %v902 = vld [vmem:[#allocation2 + $0x58] sm:$0xff]
        %v903 = vld [vmem:[#allocation2 + $0x60] sm:$0xff]
        %v904 = vld [vmem:[#allocation2 + $0x68] sm:$0xff]
        %v905 = vld [vmem:[#allocation2 + $0x70] sm:$0xff]
        %v906 = vld [vmem:[#allocation2 + $0x78] sm:$0xff]
        %v907 = vld [vmem:[#allocation2 + $0x80] sm:$0xff]
        %v908 = vld [vmem:[#allocation2 + $0x88] sm:$0xff]
        %v909 = vld [vmem:[#allocation2 + $0x90] sm:$0xff]
        %v910 = vld [vmem:[#allocation2 + $0x98] sm:$0xff]
        %v911 = vld [vmem:[#allocation2 + $0xa0] sm:$0xff]
        %v912 = vld [vmem:[#allocation2 + $0xa8] sm:$0xff]
        %v913 = vld [vmem:[#allocation2 + $0xb0] sm:$0xff]
        %v914 = vld [vmem:[#allocation2 + $0xb8] sm:$0xff]
        %v915 = vld [vmem:[#allocation2 + $0xc0] sm:$0xff]
        %v916 = vld [vmem:[#allocation2 + $0xc8] sm:$0xff]
        %v917 = vld [vmem:[#allocation2 + $0xd0] sm:$0xff]
        %v918 = vld [vmem:[#allocation2 + $0xd8] sm:$0xff]
        %v919 = vld [vmem:[#allocation2 + $0xe0] sm:$0xff]
        %v920 = vld [vmem:[#allocation2 + $0xe8] sm:$0xff]
        %v921 = vld [vmem:[#allocation2 + $0xf0] sm:$0xff]
        %v922 = vld [vmem:[#allocation2 + $0xf8] sm:$0xff]
        %v923 = vld [vmem:[%s257] sm:$0x1]
        %v925 = vperm.slane %v923, 0
        %v927 = vadd.f32 %v891, %v925
        %v928 = vadd.f32 %v892, %v925
        %v929 = vadd.f32 %v893, %v925
        %v930 = vadd.f32 %v894, %v925
        %v931 = vadd.f32 %v895, %v925
        %v932 = vadd.f32 %v896, %v925
        %v933 = vadd.f32 %v897, %v925
        %v934 = vadd.f32 %v898, %v925
        %v935 = vadd.f32 %v899, %v925
        %v936 = vadd.f32 %v900, %v925
        %v937 = vadd.f32 %v901, %v925
        %v938 = vadd.f32 %v902, %v925
        %v939 = vadd.f32 %v903, %v925
        %v940 = vadd.f32 %v904, %v925
        %v941 = vadd.f32 %v905, %v925
        %v942 = vadd.f32 %v906, %v925
        %v943 = vadd.f32 %v907, %v925
        %v944 = vadd.f32 %v908, %v925
        %v945 = vadd.f32 %v909, %v925
        %v946 = vadd.f32 %v910, %v925
        %v947 = vadd.f32 %v911, %v925
        %v948 = vadd.f32 %v912, %v925
        %v949 = vadd.f32 %v913, %v925
        %v950 = vadd.f32 %v914, %v925
        %v951 = vadd.f32 %v915, %v925
        %v952 = vadd.f32 %v916, %v925
        %v953 = vadd.f32 %v917, %v925
        %v954 = vadd.f32 %v918, %v925
        %v955 = vadd.f32 %v919, %v925
        %v956 = vadd.f32 %v920, %v925
        %v957 = vadd.f32 %v921, %v925
        %v958 = vadd.f32 %v922, %v925
        %959 = vst.msk [vmem:[%s265] sm:$0xff] %vm855, %v927
        %960 = vst.msk [vmem:[%s265 + $0x8] sm:$0xff] %vm855, %v928
        %961 = vst.msk [vmem:[%s265 + $0x10] sm:$0xff] %vm855, %v929
        %962 = vst.msk [vmem:[%s265 + $0x18] sm:$0xff] %vm855, %v930
        %963 = vst.msk [vmem:[%s265 + $0x20] sm:$0xff] %vm855, %v931
        %964 = vst.msk [vmem:[%s265 + $0x28] sm:$0xff] %vm855, %v932
        %965 = vst.msk [vmem:[%s265 + $0x30] sm:$0xff] %vm855, %v933
        %966 = vst.msk [vmem:[%s265 + $0x38] sm:$0xff] %vm855, %v934
        %967 = vst.msk [vmem:[%s265 + $0x40] sm:$0xff] %vm855, %v935
        %968 = vst.msk [vmem:[%s265 + $0x48] sm:$0xff] %vm855, %v936
        %969 = vst.msk [vmem:[%s265 + $0x50] sm:$0xff] %vm855, %v937
        %970 = vst.msk [vmem:[%s265 + $0x58] sm:$0xff] %vm855, %v938
        %971 = vst.msk [vmem:[%s265 + $0x60] sm:$0xff] %vm855, %v939
        %972 = vst.msk [vmem:[%s265 + $0x68] sm:$0xff] %vm855, %v940
        %973 = vst.msk [vmem:[%s265 + $0x70] sm:$0xff] %vm855, %v941
        %974 = vst.msk [vmem:[%s265 + $0x78] sm:$0xff] %vm855, %v942
        %975 = vst.msk [vmem:[%s265 + $0x80] sm:$0xff] %vm855, %v943
        %976 = vst.msk [vmem:[%s265 + $0x88] sm:$0xff] %vm855, %v944
        %977 = vst.msk [vmem:[%s265 + $0x90] sm:$0xff] %vm855, %v945
        %978 = vst.msk [vmem:[%s265 + $0x98] sm:$0xff] %vm855, %v946
        %979 = vst.msk [vmem:[%s265 + $0xa0] sm:$0xff] %vm855, %v947
        %980 = vst.msk [vmem:[%s265 + $0xa8] sm:$0xff] %vm855, %v948
        %981 = vst.msk [vmem:[%s265 + $0xb0] sm:$0xff] %vm855, %v949
        %982 = vst.msk [vmem:[%s265 + $0xb8] sm:$0xff] %vm855, %v950
        %983 = vst.msk [vmem:[%s265 + $0xc0] sm:$0xff] %vm855, %v951
        %984 = vst.msk [vmem:[%s265 + $0xc8] sm:$0xff] %vm855, %v952
        %985 = vst.msk [vmem:[%s265 + $0xd0] sm:$0xff] %vm855, %v953
        %986 = vst.msk [vmem:[%s265 + $0xd8] sm:$0xff] %vm855, %v954
        %987 = vst.msk [vmem:[%s265 + $0xe0] sm:$0xff] %vm855, %v955
        %988 = vst.msk [vmem:[%s265 + $0xe8] sm:$0xff] %vm855, %v956
        %989 = vst.msk [vmem:[%s265 + $0xf0] sm:$0xff] %vm855, %v957
        %990 = vst.msk [vmem:[%s265 + $0xf8] sm:$0xff] %vm855, %v958
      $region40: #{tpu_custom_call.1} parent=31 // pred_fallthru
        _
      %s991 = smul.u32 32, %s19
      %p992 = scmp.lt.s32.totalorder %s991, 63
      %s993 = scalar_select %p992, %s991, 63
      %p994 = scmp.lt.s32.totalorder %s20, 0
      %s995 = scalar_select %p994, %s20, 0
      %s996 = sadd.s32 %s995, %s993
      %s997 = smul.addr %s996, 8
      %s998 = scalar_lea.vmem %s3, %s997
      // Predicated region
      $region41: #{tpu_custom_call.1} parent=31 // pred_check
        %p999 = pneg %p135
      $region42: #{tpu_custom_call.1} parent=31 // pred_check_branch
        %1001 = sbr.rel (%p999) target = $region44
      $region43: #{tpu_custom_call.1} parent=31 // pred_region
        %s1002 = smul.u32 32, %s19
      $region44: #{tpu_custom_call.1} parent=31 // pred_fallthru
        _
    $region32: #{tpu_custom_call.1} parent=5 // pred_fallthru
      _
    %p1003 = scmp.le.s32.totalorder 2, %s9
    // Predicated region
    $region45: #{tpu_custom_call.1} parent=5 // pred_check
      %p1004 = pneg %p1003
    $region46: #{tpu_custom_call.1} parent=5 // pred_check_branch
      %1006 = sbr.rel (%p1004) target = $region48
    $region47: #{tpu_custom_call.1} parent=5 // pred_region
      %s1007 = ssub.s32 %s9, 2
      // Predicated region
      $region49: #{tpu_custom_call.1} parent=47 // pred_check
        %p1008 = pneg %p141
      $region50: #{tpu_custom_call.1} parent=47 // pred_check_branch
        %1010 = sbr.rel (%p1008) target = $region52
      $region51: #{tpu_custom_call.1} parent=47 // pred_region
        %s1011 = smul.u32 32, %s22
        %p1012 = scmp.lt.s32.totalorder %s1011, 63
        %s1013 = scalar_select %p1012, %s1011, 63
        %p1014 = scmp.lt.s32.totalorder %s23, 0
        %s1015 = scalar_select %p1014, %s23, 0
        %s1016 = sadd.s32 %s1015, %s1013
        %s1017 = smul.addr %s1016, 8
        %s1018 = scalar_lea.vmem %s3, %s1017
      $region52: #{tpu_custom_call.1} parent=47 // pred_fallthru
        _
    $region48: #{tpu_custom_call.1} parent=5 // pred_fallthru
      _
  $region6: #{tpu_custom_call.1} parent=0 // loop_footer
    %s13 = sadd.s32 1, %s9
  $region7: #{tpu_custom_call.1} parent=0 // loop_footer_branch
    %8 = sbr.rel target = $region3
  $region8: #{tpu_custom_call.1} parent=0 // loop_exit
    _

</llo_original>
